<compile_context>
chip_gen: v6e
topology: v6e:2x2x1
jax: 0.10.0
libtpu: 0.0.40
codegen_flags: <defaults>
</compile_context>

<pallas_src>
import jax
import jax.numpy as jnp
from jax.experimental import pallas as pl
from jax.experimental.pallas import tpu as pltpu

_H1, _H2, _OUT = 256, 128, 10


def mlp_kernel(x_ref, w1_ref, b1_ref, w2_ref, b2_ref, w3_ref, b3_ref, o_ref, acc_ref):
    """One (batch-tile i, K-tile k) grid step.

    fc1 accumulates in an f32 VMEM scratch across the K axis; on the last K
    step, bias+ReLU and the (tiny) fc2/fc3 matmuls run and the (TB, 10) block
    is stored directly (no padded HBM writeback)."""
    k = pl.program_id(1)

    # f32 -> bf16 cast on-tile: free VPU filler under the DMA, avoids a
    # separate wrapper-side cast pass over x.
    partial = jnp.dot(x_ref[...].astype(jnp.bfloat16), w1_ref[...],
                      preferred_element_type=jnp.float32)

    @pl.when(k == 0)
    def _():
        acc_ref[...] = partial

    @pl.when(k > 0)
    def _():
        acc_ref[...] += partial

    @pl.when(k == pl.num_programs(1) - 1)
    def _():
        h1 = jnp.maximum(acc_ref[...] + b1_ref[...], 0.0)
        h2 = jnp.dot(h1.astype(jnp.bfloat16), w2_ref[...],
                     preferred_element_type=jnp.float32)
        h2 = jnp.maximum(h2 + b2_ref[...], 0.0)
        o_ref[...] = (jnp.dot(h2.astype(jnp.bfloat16), w3_ref[...],
                              preferred_element_type=jnp.float32)
                      + b3_ref[...]).astype(o_ref.dtype)


def _round_up(x, m):
    return (x + m - 1) // m * m


def _vmem_capacity_bytes():
    try:
        cap = getattr(pltpu.get_tpu_info(), "vmem_capacity_bytes", None)
        if cap:
            return int(cap)
    except Exception:
        pass
    return 64 << 20  # conservative fallback: v7x per-TensorCore VMEM


def _tile_bytes(rows, cols, itemsize):
    # VMEM layout pads the second-minor dim to 8 sublanes, minor dim to 128 lanes.
    return _round_up(rows, 8) * _round_up(cols, 128) * itemsize


def _footprint_bytes(tb, tk):
    fb = 0
    fb += 2 * _tile_bytes(tb, tk, 4)        # x tiles (f32, double-buffered)
    fb += 2 * _tile_bytes(tk, _H1, 2)       # w1 K-slabs (bf16, double-buffered)
    fb += 2 * _tile_bytes(tb, _OUT, 4)      # output tiles (double-buffered)
    fb += 1 * _tile_bytes(tb, _H1, 4)       # fc1 f32 accumulator (scratch)
    fb += 2 * (_tile_bytes(_H1, _H2, 2) + _tile_bytes(_H2, _OUT, 2)
               + _tile_bytes(1, _H1, 4) + _tile_bytes(1, _H2, 4)
               + _tile_bytes(1, _OUT, 4))   # small resident weights/biases
    fb += 2 << 20                           # compiler/internal headroom
    return fb


def _choose_tiles(B, D, tb_target, budget):
    d_pad = _round_up(D, 128)
    # K tile: keep the double-buffered w1 slab <= ~1/3 of budget so the batch
    # tile gets the rest (relevant when D is image-sized).
    tk = d_pad
    while tk > 128 and 2 * _tile_bytes(tk, _H1, 2) > budget // 3:
        tk = _round_up(tk // 2, 128)
    # Batch tile: as big as the budget allows, capped at the (padded) batch.
    tb = max(8, min(_round_up(tb_target, 8), _round_up(max(B, 8), 8)))
    while tb > 8 and _footprint_bytes(tb, tk) > budget:
        tb = max(8, _round_up(tb // 2, 8))
    b_pad = _round_up(max(B, 8), tb)
    # Ensure >= 2 batch steps when possible so "parallel" shards both v7x TCs.
    if b_pad // tb < 2 and b_pad >= 16:
        tb = _round_up(b_pad // 2, 8)
        b_pad = _round_up(max(B, 8), tb)
    d_pad = _round_up(d_pad, tk)
    return tb, tk, b_pad, d_pad


def starting_network_forward(x, params, *, tb_target=1024):
    """x: (B, C, H, W). params: w1 (D,256), b1 (1,256), w2 (256,128), b2 (1,128),
    w3 (128,10), b3 (1,10)."""
    B = x.shape[0]
    D = 1
    for s in x.shape[1:]:
        D *= s
    x2d = x.reshape(B, D).astype(jnp.float32)   # nn.Flatten(); bf16 cast happens in-kernel

    capacity = _vmem_capacity_bytes()
    budget = int(capacity * 0.7)   # ~45 MiB on v7x (64 MiB), ~90 MiB on v5e/v6e (128 MiB)
    tb, tk, b_pad, d_pad = _choose_tiles(B, D, tb_target, budget)

    if (b_pad, d_pad) != (B, D):
        x2d = jnp.pad(x2d, ((0, b_pad - B), (0, d_pad - D)))

    w1 = params["w1"].astype(jnp.bfloat16)
    if d_pad != D:
        w1 = jnp.pad(w1, ((0, d_pad - D), (0, 0)))   # zero rows: no effect on the dot
    w2 = params["w2"].astype(jnp.bfloat16)
    w3 = params["w3"].astype(jnp.bfloat16)
    b1 = params["b1"].astype(jnp.float32).reshape(1, _H1)
    b2 = params["b2"].astype(jnp.float32).reshape(1, _H2)
    b3 = params["b3"].astype(jnp.float32).reshape(1, _OUT)

    nb, nk = b_pad // tb, d_pad // tk
    footprint = _footprint_bytes(tb, tk)
    vmem_limit = int(min(capacity - (2 << 20), max(footprint + (8 << 20), 32 << 20)))

    flops = 2 * b_pad * (d_pad * _H1 + _H1 * _H2 + _H2 * _OUT)
    bytes_accessed = (b_pad * d_pad * 4 + w1.size * 2 + w2.size * 2 + w3.size * 2
                      + (b1.size + b2.size + b3.size) * 4 + b_pad * _OUT * 4)

    out = pl.pallas_call(
        mlp_kernel,
        out_shape=jax.ShapeDtypeStruct((b_pad, _OUT), jnp.float32),
        grid_spec=pltpu.PrefetchScalarGridSpec(
            num_scalar_prefetch=0,
            grid=(nb, nk),                                       # reduction (K) axis last
            in_specs=[
                pl.BlockSpec((tb, tk), lambda i, k: (i, k)),     # x tile (double-buffered)
                pl.BlockSpec((tk, _H1), lambda i, k: (k, 0)),    # w1 K-slab
                pl.BlockSpec((1, _H1), lambda i, k: (0, 0)),     # b1 (VMEM-resident)
                pl.BlockSpec((_H1, _H2), lambda i, k: (0, 0)),   # w2
                pl.BlockSpec((1, _H2), lambda i, k: (0, 0)),     # b2
                pl.BlockSpec((_H2, _OUT), lambda i, k: (0, 0)),  # w3
                pl.BlockSpec((1, _OUT), lambda i, k: (0, 0)),    # b3
            ],
            out_specs=pl.BlockSpec((tb, _OUT), lambda i, k: (i, 0)),
            scratch_shapes=[pltpu.VMEM((tb, _H1), jnp.float32)],
        ),
        compiler_params=pltpu.CompilerParams(
            dimension_semantics=("parallel", "arbitrary"),
            vmem_limit_bytes=vmem_limit,
        ),
        cost_estimate=pl.CostEstimate(
            flops=int(flops), transcendentals=0, bytes_accessed=int(bytes_accessed)),
    )(x2d, w1, b1, w2, b2, w3, b3)

    return out[:B]


def init_params(key, size):
    """Deterministic init matching PyTorch nn.Linear default (uniform +/- 1/sqrt(fan_in))."""
    def linear(key, fan_in, fan_out):
        kw, kb = jax.random.split(key)
        bound = 1.0 / jnp.sqrt(fan_in)
        w = jax.random.uniform(kw, (fan_in, fan_out), jnp.float32, -bound, bound)
        b = jax.random.uniform(kb, (1, fan_out), jnp.float32, -bound, bound)
        return w, b

    k1, k2, k3 = jax.random.split(key, 3)
    w1, b1 = linear(k1, size, _H1)
    w2, b2 = linear(k2, _H1, _H2)
    w3, b3 = linear(k3, _H2, _OUT)
    return {"w1": w1, "b1": b1, "w2": w2, "b2": b2, "w3": w3, "b3": b3}


if __name__ == "__main__":
    # Small shapes consistent with the module: input_shape=(1, 16, 16) -> size = 256
    B, C, H, W = 2, 1, 16, 16
    size = C * H * W

    key = jax.random.PRNGKey(0)
    kx, kp = jax.random.split(key)
    x = jax.random.normal(kx, (B, C, H, W), jnp.float32)
    params = init_params(kp, size)

    out = starting_network_forward(x, params)
    out = jax.block_until_ready(out)
    assert out.shape == (B, 10)

    # Tight check vs a reference using the same bf16 operand casts as the kernel.
    x_bf = x.reshape(B, size).astype(jnp.bfloat16)
    h = jnp.maximum(jnp.dot(x_bf, params["w1"].astype(jnp.bfloat16),
                            preferred_element_type=jnp.float32) + params["b1"], 0.0)
    h = jnp.maximum(jnp.dot(h.astype(jnp.bfloat16), params["w2"].astype(jnp.bfloat16),
                            preferred_element_type=jnp.float32) + params["b2"], 0.0)
    ref_bf = (jnp.dot(h.astype(jnp.bfloat16), params["w3"].astype(jnp.bfloat16),
                      preferred_element_type=jnp.float32) + params["b3"])
    assert jnp.allclose(out, ref_bf, atol=2e-3, rtol=2e-3), \
        float(jnp.max(jnp.abs(out - ref_bf)))

    # Loose check against the full-precision fp32 reference (bf16 quantization noise).
    x32 = x.reshape(B, size)
    h32 = jnp.maximum(x32 @ params["w1"] + params["b1"], 0.0)
    h32 = jnp.maximum(h32 @ params["w2"] + params["b2"], 0.0)
    ref32 = h32 @ params["w3"] + params["b3"]
    assert jnp.allclose(out, ref32, atol=5e-2, rtol=5e-2), \
        float(jnp.max(jnp.abs(out - ref32)))

    print("KERNEL_OK")
</pallas_src>

<mosaic_0001>
module attributes {stable_mosaic.version = 11 : i64} {
  func.func @mlp_kernel(%arg0: i32, %arg1: i32, %arg2: memref<8x256xf32, #tpu.memory_space<vmem>>, %arg3: memref<256x256xbf16, #tpu.memory_space<vmem>>, %arg4: memref<1x256xf32, #tpu.memory_space<vmem>>, %arg5: memref<256x128xbf16, #tpu.memory_space<vmem>>, %arg6: memref<1x128xf32, #tpu.memory_space<vmem>>, %arg7: memref<128x10xbf16, #tpu.memory_space<vmem>>, %arg8: memref<1x10xf32, #tpu.memory_space<vmem>>, %arg9: memref<8x10xf32, #tpu.memory_space<vmem>>, %arg10: memref<8x256xf32, #tpu.memory_space<vmem>>) attributes {dimension_semantics = [#tpu.dimension_semantics<parallel>, #tpu.dimension_semantics<arbitrary>], iteration_bounds = array<i64: 1, 1>, scalar_prefetch = 0 : i64, scratch_operands = 1 : i64, tpu.core_type = #tpu.core_type<tc>, window_params = [{transform_indices = @transform_0, window_bounds = array<i64: 8, 256>}, {transform_indices = @transform_1, window_bounds = array<i64: 256, 256>}, {pipeline_mode = #tpu.pipeline_mode<synchronous>, transform_indices = @transform_2, window_bounds = array<i64: 1, 256>}, {pipeline_mode = #tpu.pipeline_mode<synchronous>, transform_indices = @transform_3, window_bounds = array<i64: 256, 128>}, {pipeline_mode = #tpu.pipeline_mode<synchronous>, transform_indices = @transform_4, window_bounds = array<i64: 1, 128>}, {pipeline_mode = #tpu.pipeline_mode<synchronous>, transform_indices = @transform_5, window_bounds = array<i64: 128, 10>}, {pipeline_mode = #tpu.pipeline_mode<synchronous>, transform_indices = @transform_6, window_bounds = array<i64: 1, 10>}, {transform_indices = @transform_7, window_bounds = array<i64: 8, 10>}]} {
    %c0 = arith.constant 0 : index
    %c0_0 = arith.constant 0 : index
    %0 = vector.load %arg2[%c0, %c0_0] : memref<8x256xf32, #tpu.memory_space<vmem>>, vector<8x256xf32>
    %1 = arith.truncf %0 : vector<8x256xf32> to vector<8x256xbf16>
    %c0_1 = arith.constant 0 : index
    %c0_2 = arith.constant 0 : index
    %2 = vector.load %arg3[%c0_1, %c0_2] : memref<256x256xbf16, #tpu.memory_space<vmem>>, vector<256x256xbf16>
    %cst = arith.constant dense<0.000000e+00> : vector<8x256xf32>
    %3 = tpu.matmul %1, %2, %cst {dimension_numbers = #tpu.dot_dimension_numbers<[1], [0], [0], [1], [0, 0, 1, 1], [], []>} : vector<8x256xbf16>, vector<256x256xbf16>, vector<8x256xf32> -> vector<8x256xf32>
    %c0_i32 = arith.constant 0 : i32
    %4 = arith.cmpi eq, %arg1, %c0_i32 : i32
    %5 = arith.extui %4 : i1 to i32
    %c0_i32_3 = arith.constant 0 : i32
    %6 = arith.cmpi ne, %5, %c0_i32_3 : i32
    scf.if %6 {
      %c0_8 = arith.constant 0 : index
      %c0_9 = arith.constant 0 : index
      %13 = vector.load %arg10[%c0_8, %c0_9] : memref<8x256xf32, #tpu.memory_space<vmem>>, vector<8x256xf32>
      tpu.vector_store %arg10[%c0_8, %c0_9], %3 {strides = array<i32>} : memref<8x256xf32, #tpu.memory_space<vmem>>, vector<8x256xf32>,
    } else {
    }
    %c0_i32_4 = arith.constant 0 : i32
    %7 = arith.cmpi sgt, %arg1, %c0_i32_4 : i32
    %8 = arith.extui %7 : i1 to i32
    %c0_i32_5 = arith.constant 0 : i32
    %9 = arith.cmpi ne, %8, %c0_i32_5 : i32
    scf.if %9 {
      %c0_8 = arith.constant 0 : index
      %c0_9 = arith.constant 0 : index
      %13 = vector.load %arg10[%c0_8, %c0_9] : memref<8x256xf32, #tpu.memory_space<vmem>>, vector<8x256xf32>
      %14 = arith.addf %13, %3 : vector<8x256xf32>
      %c0_10 = arith.constant 0 : index
      %c0_11 = arith.constant 0 : index
      %15 = vector.load %arg10[%c0_10, %c0_11] : memref<8x256xf32, #tpu.memory_space<vmem>>, vector<8x256xf32>
      tpu.vector_store %arg10[%c0_10, %c0_11], %14 {strides = array<i32>} : memref<8x256xf32, #tpu.memory_space<vmem>>, vector<8x256xf32>,
    } else {
    }
    %c0_i32_6 = arith.constant 0 : i32
    %10 = arith.cmpi eq, %arg1, %c0_i32_6 : i32
    %11 = arith.extui %10 : i1 to i32
    %c0_i32_7 = arith.constant 0 : i32
    %12 = arith.cmpi ne, %11, %c0_i32_7 : i32
    scf.if %12 {
      %c0_8 = arith.constant 0 : index
      %c0_9 = arith.constant 0 : index
      %13 = vector.load %arg10[%c0_8, %c0_9] : memref<8x256xf32, #tpu.memory_space<vmem>>, vector<8x256xf32>
      %c0_10 = arith.constant 0 : index
      %c0_11 = arith.constant 0 : index
      %14 = vector.load %arg4[%c0_10, %c0_11] : memref<1x256xf32, #tpu.memory_space<vmem>>, vector<1x256xf32>
      %15 = vector.broadcast %14 : vector<1x256xf32> to vector<8x256xf32>
      %16 = arith.addf %13, %15 : vector<8x256xf32>
      %cst_12 = arith.constant 0.000000e+00 : f32
      %17 = vector.broadcast %cst_12 : f32 to vector<8x256xf32>
      %18 = arith.maximumf %16, %17 : vector<8x256xf32>
      %19 = arith.truncf %18 : vector<8x256xf32> to vector<8x256xbf16>
      %c0_13 = arith.constant 0 : index
      %c0_14 = arith.constant 0 : index
      %20 = vector.load %arg5[%c0_13, %c0_14] : memref<256x128xbf16, #tpu.memory_space<vmem>>, vector<256x128xbf16>
      %cst_15 = arith.constant dense<0.000000e+00> : vector<8x128xf32>
      %21 = tpu.matmul %19, %20, %cst_15 {dimension_numbers = #tpu.dot_dimension_numbers<[1], [0], [0], [1], [0, 0, 1, 1], [], []>} : vector<8x256xbf16>, vector<256x128xbf16>, vector<8x128xf32> -> vector<8x128xf32>
      %c0_16 = arith.constant 0 : index
      %c0_17 = arith.constant 0 : index
      %22 = vector.load %arg6[%c0_16, %c0_17] : memref<1x128xf32, #tpu.memory_space<vmem>>, vector<1x128xf32>
      %23 = vector.broadcast %22 : vector<1x128xf32> to vector<8x128xf32>
      %24 = arith.addf %21, %23 : vector<8x128xf32>
      %cst_18 = arith.constant 0.000000e+00 : f32
      %25 = vector.broadcast %cst_18 : f32 to vector<8x128xf32>
      %26 = arith.maximumf %24, %25 : vector<8x128xf32>
      %27 = arith.truncf %26 : vector<8x128xf32> to vector<8x128xbf16>
      %c0_19 = arith.constant 0 : index
      %c0_20 = arith.constant 0 : index
      %28 = vector.load %arg7[%c0_19, %c0_20] : memref<128x10xbf16, #tpu.memory_space<vmem>>, vector<128x10xbf16>
      %cst_21 = arith.constant dense<0.000000e+00> : vector<8x10xf32>
      %29 = tpu.matmul %27, %28, %cst_21 {dimension_numbers = #tpu.dot_dimension_numbers<[1], [0], [0], [1], [0, 0, 1, 1], [], []>} : vector<8x128xbf16>, vector<128x10xbf16>, vector<8x10xf32> -> vector<8x10xf32>
      %c0_22 = arith.constant 0 : index
      %c0_23 = arith.constant 0 : index
      %30 = vector.load %arg8[%c0_22, %c0_23] : memref<1x10xf32, #tpu.memory_space<vmem>>, vector<1x10xf32>
      %31 = vector.broadcast %30 : vector<1x10xf32> to vector<8x10xf32>
      %32 = arith.addf %29, %31 : vector<8x10xf32>
      %c0_24 = arith.constant 0 : index
      %c0_25 = arith.constant 0 : index
      %33 = vector.load %arg9[%c0_24, %c0_25] : memref<8x10xf32, #tpu.memory_space<vmem>>, vector<8x10xf32>
      tpu.vector_store %arg9[%c0_24, %c0_25], %32 {strides = array<i32>} : memref<8x10xf32, #tpu.memory_space<vmem>>, vector<8x10xf32>,
    } else {
    }
    return
  }
  func.func @transform_0(%arg0: i32, %arg1: i32) -> (i32, i32) {
    %c0_i32 = arith.constant 0 : i32
    return %arg0, %arg1 : i32, i32
  }
  func.func @transform_1(%arg0: i32, %arg1: i32) -> (i32, i32) {
    %c0_i32 = arith.constant 0 : i32
    %c0_i32_0 = arith.constant 0 : i32
    return %arg1, %c0_i32 : i32, i32
  }
  func.func @transform_2(%arg0: i32, %arg1: i32) -> (i32, i32) {
    %c0_i32 = arith.constant 0 : i32
    %c0_i32_0 = arith.constant 0 : i32
    %c0_i32_1 = arith.constant 0 : i32
    return %c0_i32, %c0_i32_0 : i32, i32
  }
  func.func @transform_3(%arg0: i32, %arg1: i32) -> (i32, i32) {
    %c0_i32 = arith.constant 0 : i32
    %c0_i32_0 = arith.constant 0 : i32
    %c0_i32_1 = arith.constant 0 : i32
    return %c0_i32, %c0_i32_0 : i32, i32
  }
  func.func @transform_4(%arg0: i32, %arg1: i32) -> (i32, i32) {
    %c0_i32 = arith.constant 0 : i32
    %c0_i32_0 = arith.constant 0 : i32
    %c0_i32_1 = arith.constant 0 : i32
    return %c0_i32, %c0_i32_0 : i32, i32
  }
  func.func @transform_5(%arg0: i32, %arg1: i32) -> (i32, i32) {
    %c0_i32 = arith.constant 0 : i32
    %c0_i32_0 = arith.constant 0 : i32
    %c0_i32_1 = arith.constant 0 : i32
    return %c0_i32, %c0_i32_0 : i32, i32
  }
  func.func @transform_6(%arg0: i32, %arg1: i32) -> (i32, i32) {
    %c0_i32 = arith.constant 0 : i32
    %c0_i32_0 = arith.constant 0 : i32
    %c0_i32_1 = arith.constant 0 : i32
    return %c0_i32, %c0_i32_0 : i32, i32
  }
  func.func @transform_7(%arg0: i32, %arg1: i32) -> (i32, i32) {
    %c0_i32 = arith.constant 0 : i32
    %c0_i32_0 = arith.constant 0 : i32
    return %arg0, %c0_i32 : i32, i32
  }
}

</mosaic_0001>

<llo_original>
// kernel: tpu_custom_call.1
$region0: #{tpu_custom_call.1}
  #allocation0 [shape = 'u32[]', space=smem, size = 0x4, offset = 0x4, fixed_abs, tag = 'smem constant byte address 0x4 - core index']
  #allocation1 [shape = 'u32[144,128]{1,0:T(1,128)}', space=vmem, size = 0x12000, scoped, tag = 'internal scratch']
  #allocation2 [shape = 'f32[8,256]{1,0:T(8,128)}', space=vmem, size = 0x2000, scoped, tag = 'scratch operand']
  %s0 = inlined_call_operand.vmem [shape: f32[8,256], index: 0, kind: input, shape index: {}]
  %s1 = inlined_call_operand.hbm [shape: bf16[256,256], index: 1, kind: input, shape index: {}]
  %s2 = inlined_call_operand.vmem [shape: f32[1,256], index: 2, kind: input, shape index: {}]
  %s3 = inlined_call_operand.hbm [shape: bf16[256,128], index: 3, kind: input, shape index: {}]
  %s4 = inlined_call_operand.vmem [shape: f32[1,128], index: 4, kind: input, shape index: {}]
  %s5 = inlined_call_operand.vmem [shape: bf16[128,10], index: 5, kind: input, shape index: {}]
  %s6 = inlined_call_operand.vmem [shape: f32[1,10], index: 6, kind: input, shape index: {}]
  %s7 = inlined_call_operand.hbm [shape: f32[8,10], index: 7, kind: output, shape index: {}]
  %s8 = sld [smem:[#allocation0]]
  $region58: #{tpu_custom_call.1} parent=0
    _
  %s10 = ssub.s32 1, %s8
  %s11 = scalar_select 0, %s10, %s8
  $region1: #{tpu_custom_call.1} parent=0
    #allocation3 [shape = 'u8[131072]{0}', space=vmem, size = 0x20000, scoped, tag = 'input window, operand 1, single buffered']
    #allocation4 [shape = 's32[1]{0}', space=sflag, size = 0x4, scoped, tag = 'scoped memory for tpu_custom_call.1']
    #allocation5 [shape = 's32[1]{0}', space=sflag, size = 0x4, scoped, tag = 'scoped memory for tpu_custom_call.1']
    #allocation6 [shape = 'u8[65536]{0}', space=vmem, size = 0x10000, scoped, tag = 'input window, operand 3, single buffered']
    #allocation7 [shape = 's32[1]{0}', space=sflag, size = 0x4, scoped, tag = 'scoped memory for tpu_custom_call.1']
    #allocation8 [shape = 'u8[4096]{0}', space=vmem, size = 0x1000, scoped, tag = 'output window, operand 0, single buffered']
    %12 = vsyncpa [#allocation4], 0
    %13 = vsyncpa [#allocation7], 0
    %14 = vsyncpa [#allocation5], 0
    // Predicated region
    $region2: #{tpu_custom_call.1} parent=1 // pred_check
      _
    $region3: #{tpu_custom_call.1} parent=1 // pred_check_branch
      %16 = sbr.rel (0) target = $region5
    $region4: #{tpu_custom_call.1} parent=1 // pred_region
      _
    $region5: #{tpu_custom_call.1} parent=1 // pred_fallthru
      _
    // Predicated region
    $region6: #{tpu_custom_call.1} parent=1 // pred_check
      _
    $region7: #{tpu_custom_call.1} parent=1 // pred_check_branch
      %18 = sbr.rel (0) target = $region9
    $region8: #{tpu_custom_call.1} parent=1 // pred_region
      %s20 = ssub.s32 4096, 4096
      %21 = vsyncadd [#allocation4], %s20
      %s22 = sshll.u32 [#allocation3], 4
      %s23 = int_to_ptr.vmem [resolvable:$true] %s22
      %28 = dma.hbm_to_vmem [thread:$0]  %s1, 4096, %s23, [#allocation4], 128, 128, 8
    $region9: #{tpu_custom_call.1} parent=1 // pred_fallthru
      _
    // Predicated region
    $region10: #{tpu_custom_call.1} parent=1 // pred_check
      _
    $region11: #{tpu_custom_call.1} parent=1 // pred_check_branch
      %30 = sbr.rel (0) target = $region13
    $region12: #{tpu_custom_call.1} parent=1 // pred_region
      _
    $region13: #{tpu_custom_call.1} parent=1 // pred_fallthru
      _
    // Predicated region
    $region14: #{tpu_custom_call.1} parent=1 // pred_check
      _
    $region15: #{tpu_custom_call.1} parent=1 // pred_check_branch
      %32 = sbr.rel (0) target = $region17
    $region16: #{tpu_custom_call.1} parent=1 // pred_region
      %s34 = ssub.s32 2048, 2048
      %35 = vsyncadd [#allocation7], %s34
      %s36 = sshll.u32 [#allocation6], 4
      %s37 = int_to_ptr.vmem [resolvable:$true] %s36
      %42 = dma.hbm_to_vmem [thread:$0]  %s3, 2048, %s37, [#allocation7], 64, 64, 4
    $region17: #{tpu_custom_call.1} parent=1 // pred_fallthru
      _
    // Predicated region
    $region18: #{tpu_custom_call.1} parent=1 // pred_check
      _
    $region19: #{tpu_custom_call.1} parent=1 // pred_check_branch
      %44 = sbr.rel (0) target = $region21
    $region20: #{tpu_custom_call.1} parent=1 // pred_region
      _
    $region21: #{tpu_custom_call.1} parent=1 // pred_fallthru
      _
    // Predicated region
    $region22: #{tpu_custom_call.1} parent=1 // pred_check
      _
    $region23: #{tpu_custom_call.1} parent=1 // pred_check_branch
      %46 = sbr.rel (0) target = $region25
    $region24: #{tpu_custom_call.1} parent=1 // pred_region
      _
    $region25: #{tpu_custom_call.1} parent=1 // pred_fallthru
      _
    // Predicated region
    $region26: #{tpu_custom_call.1} parent=1 // pred_check
      _
    $region27: #{tpu_custom_call.1} parent=1 // pred_check_branch
      %48 = sbr.rel (0) target = $region29
    $region28: #{tpu_custom_call.1} parent=1 // pred_region
      _
    $region29: #{tpu_custom_call.1} parent=1 // pred_fallthru
      _
    // Predicated region
    $region30: #{tpu_custom_call.1} parent=1 // pred_check
      _
    $region31: #{tpu_custom_call.1} parent=1 // pred_check_branch
      %50 = sbr.rel (0) target = $region33
    $region32: #{tpu_custom_call.1} parent=1 // pred_region
      %51 = dma.done [#allocation4], 4096
    $region33: #{tpu_custom_call.1} parent=1 // pred_fallthru
      _
    // Predicated region
    $region34: #{tpu_custom_call.1} parent=1 // pred_check
      _
    $region35: #{tpu_custom_call.1} parent=1 // pred_check_branch
      %53 = sbr.rel (0) target = $region37
    $region36: #{tpu_custom_call.1} parent=1 // pred_region
      %54 = dma.done [#allocation7], 2048
    $region37: #{tpu_custom_call.1} parent=1 // pred_fallthru
      _
    %v56 = vld [vmem:[%s0] sm:$0xff]
    %v57 = vld [vmem:[%s0 + $0x8] sm:$0xff]
    %v58 = vpack.c.bf16 %v56, %v56
    %v59 = vpack.c.bf16 %v57, %v57
    %v60 = vld [vmem:[#allocation3] sm:$0xff]
    %v61 = vld [vmem:[#allocation3 + $0x8] sm:$0xff]
    %v62 = vld [vmem:[#allocation3 + $0x10] sm:$0xff]
    %v63 = vld [vmem:[#allocation3 + $0x18] sm:$0xff]
    %v64 = vld [vmem:[#allocation3 + $0x20] sm:$0xff]
    %v65 = vld [vmem:[#allocation3 + $0x28] sm:$0xff]
    %v66 = vld [vmem:[#allocation3 + $0x30] sm:$0xff]
    %v67 = vld [vmem:[#allocation3 + $0x38] sm:$0xff]
    %v68 = vld [vmem:[#allocation3 + $0x40] sm:$0xff]
    %v69 = vld [vmem:[#allocation3 + $0x48] sm:$0xff]
    %v70 = vld [vmem:[#allocation3 + $0x50] sm:$0xff]
    %v71 = vld [vmem:[#allocation3 + $0x58] sm:$0xff]
    %v72 = vld [vmem:[#allocation3 + $0x60] sm:$0xff]
    %v73 = vld [vmem:[#allocation3 + $0x68] sm:$0xff]
    %v74 = vld [vmem:[#allocation3 + $0x70] sm:$0xff]
    %v75 = vld [vmem:[#allocation3 + $0x78] sm:$0xff]
    %v76 = vld [vmem:[#allocation3 + $0x80] sm:$0xff]
    %v77 = vld [vmem:[#allocation3 + $0x88] sm:$0xff]
    %v78 = vld [vmem:[#allocation3 + $0x90] sm:$0xff]
    %v79 = vld [vmem:[#allocation3 + $0x98] sm:$0xff]
    %v80 = vld [vmem:[#allocation3 + $0xa0] sm:$0xff]
    %v81 = vld [vmem:[#allocation3 + $0xa8] sm:$0xff]
    %v82 = vld [vmem:[#allocation3 + $0xb0] sm:$0xff]
    %v83 = vld [vmem:[#allocation3 + $0xb8] sm:$0xff]
    %v84 = vld [vmem:[#allocation3 + $0xc0] sm:$0xff]
    %v85 = vld [vmem:[#allocation3 + $0xc8] sm:$0xff]
    %v86 = vld [vmem:[#allocation3 + $0xd0] sm:$0xff]
    %v87 = vld [vmem:[#allocation3 + $0xd8] sm:$0xff]
    %v88 = vld [vmem:[#allocation3 + $0xe0] sm:$0xff]
    %v89 = vld [vmem:[#allocation3 + $0xe8] sm:$0xff]
    %v90 = vld [vmem:[#allocation3 + $0xf0] sm:$0xff]
    %v91 = vld [vmem:[#allocation3 + $0xf8] sm:$0xff]
    %v124 = vunpack.c.l.b16 %v60
    %v125 = vunpack.c.h.b16 %v60
    %v126 = vunpack.c.l.b16 %v61
    %v127 = vunpack.c.h.b16 %v61
    %v128 = vunpack.c.l.b16 %v62
    %v129 = vunpack.c.h.b16 %v62
    %v130 = vunpack.c.l.b16 %v63
    %v131 = vunpack.c.h.b16 %v63
    %v132 = vunpack.c.l.b16 %v64
    %v133 = vunpack.c.h.b16 %v64
    %v134 = vunpack.c.l.b16 %v65
    %v135 = vunpack.c.h.b16 %v65
    %v136 = vunpack.c.l.b16 %v66
    %v137 = vunpack.c.h.b16 %v66
    %v138 = vunpack.c.l.b16 %v67
    %v139 = vunpack.c.h.b16 %v67
    %v140 = vunpack.c.l.b16 %v68
    %v141 = vunpack.c.h.b16 %v68
    %v142 = vunpack.c.l.b16 %v69
    %v143 = vunpack.c.h.b16 %v69
    %v144 = vunpack.c.l.b16 %v70
    %v145 = vunpack.c.h.b16 %v70
    %v146 = vunpack.c.l.b16 %v71
    %v147 = vunpack.c.h.b16 %v71
    %v148 = vunpack.c.l.b16 %v72
    %v149 = vunpack.c.h.b16 %v72
    %v150 = vunpack.c.l.b16 %v73
    %v151 = vunpack.c.h.b16 %v73
    %v152 = vunpack.c.l.b16 %v74
    %v153 = vunpack.c.h.b16 %v74
    %v154 = vunpack.c.l.b16 %v75
    %v155 = vunpack.c.h.b16 %v75
    %v156 = vunpack.c.l.b16 %v76
    %v157 = vunpack.c.h.b16 %v76
    %v158 = vunpack.c.l.b16 %v77
    %v159 = vunpack.c.h.b16 %v77
    %v160 = vunpack.c.l.b16 %v78
    %v161 = vunpack.c.h.b16 %v78
    %v162 = vunpack.c.l.b16 %v79
    %v163 = vunpack.c.h.b16 %v79
    %v164 = vunpack.c.l.b16 %v80
    %v165 = vunpack.c.h.b16 %v80
    %v166 = vunpack.c.l.b16 %v81
    %v167 = vunpack.c.h.b16 %v81
    %v168 = vunpack.c.l.b16 %v82
    %v169 = vunpack.c.h.b16 %v82
    %v170 = vunpack.c.l.b16 %v83
    %v171 = vunpack.c.h.b16 %v83
    %v172 = vunpack.c.l.b16 %v84
    %v173 = vunpack.c.h.b16 %v84
    %v174 = vunpack.c.l.b16 %v85
    %v175 = vunpack.c.h.b16 %v85
    %v176 = vunpack.c.l.b16 %v86
    %v177 = vunpack.c.h.b16 %v86
    %v178 = vunpack.c.l.b16 %v87
    %v179 = vunpack.c.h.b16 %v87
    %v180 = vunpack.c.l.b16 %v88
    %v181 = vunpack.c.h.b16 %v88
    %v182 = vunpack.c.l.b16 %v89
    %v183 = vunpack.c.h.b16 %v89
    %v184 = vunpack.c.l.b16 %v90
    %v185 = vunpack.c.h.b16 %v90
    %v186 = vunpack.c.l.b16 %v91
    %v187 = vunpack.c.h.b16 %v91
    %v188 = vpack.c.b16 %v126, %v124
    %v189 = vpack.c.b16 %v127, %v125
    %v190 = vpack.c.b16 %v130, %v128
    %v191 = vpack.c.b16 %v131, %v129
    %v192 = vpack.c.b16 %v134, %v132
    %v193 = vpack.c.b16 %v135, %v133
    %v194 = vpack.c.b16 %v138, %v136
    %v195 = vpack.c.b16 %v139, %v137
    %v196 = vpack.c.b16 %v142, %v140
    %v197 = vpack.c.b16 %v143, %v141
    %v198 = vpack.c.b16 %v146, %v144
    %v199 = vpack.c.b16 %v147, %v145
    %v200 = vpack.c.b16 %v150, %v148
    %v201 = vpack.c.b16 %v151, %v149
    %v202 = vpack.c.b16 %v154, %v152
    %v203 = vpack.c.b16 %v155, %v153
    %v204 = vpack.c.b16 %v158, %v156
    %v205 = vpack.c.b16 %v159, %v157
    %v206 = vpack.c.b16 %v162, %v160
    %v207 = vpack.c.b16 %v163, %v161
    %v208 = vpack.c.b16 %v166, %v164
    %v209 = vpack.c.b16 %v167, %v165
    %v210 = vpack.c.b16 %v170, %v168
    %v211 = vpack.c.b16 %v171, %v169
    %v212 = vpack.c.b16 %v174, %v172
    %v213 = vpack.c.b16 %v175, %v173
    %v214 = vpack.c.b16 %v178, %v176
    %v215 = vpack.c.b16 %v179, %v177
    %v216 = vpack.c.b16 %v182, %v180
    %v217 = vpack.c.b16 %v183, %v181
    %v218 = vpack.c.b16 %v186, %v184
    %v219 = vpack.c.b16 %v187, %v185
    %252 = vmatprep.subr.bf16.mxu0 %v203
    %253 = vmatpush1.bf16.msra.mxu0 %v202
    %254 = vmatprep.subr.bf16.mxu0 %v201
    %255 = vmatpush1.bf16.msra.mxu0 %v200
    %256 = vmatprep.subr.bf16.mxu0 %v199
    %257 = vmatpush1.bf16.msra.mxu0 %v198
    %258 = vmatprep.subr.bf16.mxu0 %v197
    %259 = vmatpush1.bf16.msra.mxu0 %v196
    %260 = vmatprep.subr.bf16.mxu0 %v195
    %261 = vmatpush1.bf16.msra.mxu0 %v194
    %262 = vmatprep.subr.bf16.mxu0 %v193
    %263 = vmatpush1.bf16.msra.mxu0 %v192
    %264 = vmatprep.subr.bf16.mxu0 %v191
    %265 = vmatpush1.bf16.msra.mxu0 %v190
    %266 = vmatprep.subr.bf16.mxu0 %v189
    %267 = vmatpush1.bf16.msra.mxu0 %v188
    %268 = vmatprep.subr.bf16.mxu0 %v219
    %269 = vmatpush2.bf16.msra.mxu0 %v218
    %270 = vmatprep.subr.bf16.mxu0 %v217
    %271 = vmatpush2.bf16.msra.mxu0 %v216
    %272 = vmatprep.subr.bf16.mxu0 %v215
    %273 = vmatpush2.bf16.msra.mxu0 %v214
    %274 = vmatprep.subr.bf16.mxu0 %v213
    %275 = vmatpush2.bf16.msra.mxu0 %v212
    %276 = vmatprep.subr.bf16.mxu0 %v211
    %277 = vmatpush2.bf16.msra.mxu0 %v210
    %278 = vmatprep.subr.bf16.mxu0 %v209
    %279 = vmatpush2.bf16.msra.mxu0 %v208
    %280 = vmatprep.subr.bf16.mxu0 %v207
    %281 = vmatpush2.bf16.msra.mxu0 %v206
    %282 = vmatprep.subr.bf16.mxu0 %v205
    %283 = vmatpush2.bf16.msra.mxu0 %v204
    %284 = vmatprep.mubr.bf16.mxu0 %v59
    %285 = vmatmul.mubr.bf16.gmra.mxu0 %v58
    %v286 = vpop.f32.mrf.mxu0
    %v287 = vadd.f32 0.0, %v286
    %v288 = vpop.f32.mrf.mxu0
    %v289 = vadd.f32 0.0, %v288
    %v290 = vpop.f32.mrf.mxu0
    %v291 = vpop.f32.mrf.mxu0
    %292 = vdwg.mxu0
    %p293 = scmp.eq.s32.totalorder 0, 0
    // Predicated region
    $region38: #{tpu_custom_call.1} parent=1 // pred_check
      %p294 = pneg %p293
    $region39: #{tpu_custom_call.1} parent=1 // pred_check_branch
      %296 = sbr.rel (%p294) target = $region41
    $region40: #{tpu_custom_call.1} parent=1 // pred_region
      %297 = vst [vmem:[#allocation2] sm:$0xff] %v287
      %298 = vst [vmem:[#allocation2 + $0x8] sm:$0xff] %v289
    $region41: #{tpu_custom_call.1} parent=1 // pred_fallthru
      _
    %p299 = scmp.gt.s32.totalorder 0, 0
    // Predicated region
    $region42: #{tpu_custom_call.1} parent=1 // pred_check
      %p300 = pneg %p299
    $region43: #{tpu_custom_call.1} parent=1 // pred_check_branch
      %302 = sbr.rel (%p300) target = $region45
    $region44: #{tpu_custom_call.1} parent=1 // pred_region
      %v303 = vld [vmem:[#allocation2] sm:$0xff]
      %v304 = vld [vmem:[#allocation2 + $0x8] sm:$0xff]
      %v305 = vadd.f32 %v303, %v287
      %v306 = vadd.f32 %v304, %v289
      %307 = vst [vmem:[#allocation2] sm:$0xff] %v305
      %308 = vst [vmem:[#allocation2 + $0x8] sm:$0xff] %v306
    $region45: #{tpu_custom_call.1} parent=1 // pred_fallthru
      _
    // Predicated region
    $region46: #{tpu_custom_call.1} parent=1 // pred_check
      %p309 = pneg %p293
    $region47: #{tpu_custom_call.1} parent=1 // pred_check_branch
      %311 = sbr.rel (%p309) target = $region49
    $region48: #{tpu_custom_call.1} parent=1 // pred_region
      %v312 = vld [vmem:[#allocation2] sm:$0xff]
      %v313 = vld [vmem:[#allocation2 + $0x8] sm:$0xff]
      %v314 = vld [vmem:[%s2] sm:$0x3]
      %v316 = vlaneseq
      %v317 = vshrl.u32 %v316, 7
      %v318 = vsub.s32 0, %v317
      %v319 = vrot.slane %v314, %v318
      %v320 = vlaneseq
      %v321 = vshrl.u32 %v320, 7
      %v322 = vsub.s32 1, %v321
      %v323 = vrot.slane %v314, %v322
      %v326 = vadd.f32 %v312, %v319
      %v327 = vadd.f32 %v313, %v323
      %v328 = vmax.f32 %v326, 0.0
      %v329 = vmax.f32 %v327, 0.0
      %v330 = vpack.c.bf16 %v328, %v328
      %v331 = vpack.c.bf16 %v329, %v329
      %v332 = vld [vmem:[#allocation6] sm:$0xf]
      %v333 = vld [vmem:[#allocation6 + $0x4] sm:$0xf]
      %v334 = vld [vmem:[#allocation6 + $0x8] sm:$0xf]
      %v335 = vld [vmem:[#allocation6 + $0xc] sm:$0xf]
      %v336 = vld [vmem:[#allocation6 + $0x10] sm:$0xf]
      %v337 = vld [vmem:[#allocation6 + $0x14] sm:$0xf]
      %v338 = vld [vmem:[#allocation6 + $0x18] sm:$0xf]
      %v339 = vld [vmem:[#allocation6 + $0x1c] sm:$0xf]
      %v340 = vld [vmem:[#allocation6 + $0x20] sm:$0xf]
      %v341 = vld [vmem:[#allocation6 + $0x24] sm:$0xf]
      %v342 = vld [vmem:[#allocation6 + $0x28] sm:$0xf]
      %v343 = vld [vmem:[#allocation6 + $0x2c] sm:$0xf]
      %v344 = vld [vmem:[#allocation6 + $0x30] sm:$0xf]
      %v345 = vld [vmem:[#allocation6 + $0x34] sm:$0xf]
      %v346 = vld [vmem:[#allocation6 + $0x38] sm:$0xf]
      %v347 = vld [vmem:[#allocation6 + $0x3c] sm:$0xf]
      %v348 = vld [vmem:[#allocation6 + $0x40] sm:$0xf]
      %v349 = vld [vmem:[#allocation6 + $0x44] sm:$0xf]
      %v350 = vld [vmem:[#allocation6 + $0x48] sm:$0xf]
      %v351 = vld [vmem:[#allocation6 + $0x4c] sm:$0xf]
      %v352 = vld [vmem:[#allocation6 + $0x50] sm:$0xf]
      %v353 = vld [vmem:[#allocation6 + $0x54] sm:$0xf]
      %v354 = vld [vmem:[#allocation6 + $0x58] sm:$0xf]
      %v355 = vld [vmem:[#allocation6 + $0x5c] sm:$0xf]
      %v356 = vld [vmem:[#allocation6 + $0x60] sm:$0xf]
      %v357 = vld [vmem:[#allocation6 + $0x64] sm:$0xf]
      %v358 = vld [vmem:[#allocation6 + $0x68] sm:$0xf]
      %v359 = vld [vmem:[#allocation6 + $0x6c] sm:$0xf]
      %v360 = vld [vmem:[#allocation6 + $0x70] sm:$0xf]
      %v361 = vld [vmem:[#allocation6 + $0x74] sm:$0xf]
      %v362 = vld [vmem:[#allocation6 + $0x78] sm:$0xf]
      %v363 = vld [vmem:[#allocation6 + $0x7c] sm:$0xf]
      %v364 = vld [vmem:[%s4] sm:$0x1]
      %v366 = vlaneseq
      %v367 = vshrl.u32 %v366, 7
      %v368 = vsub.s32 0, %v367
      %v369 = vrot.slane %v364, %v368
      %v403 = vunpack.c.l.b16 %v332
      %v404 = vunpack.c.l.b16 %v333
      %v405 = vunpack.c.l.b16 %v334
      %v406 = vunpack.c.l.b16 %v335
      %v407 = vunpack.c.l.b16 %v336
      %v408 = vunpack.c.l.b16 %v337
      %v409 = vunpack.c.l.b16 %v338
      %v410 = vunpack.c.l.b16 %v339
      %v411 = vunpack.c.l.b16 %v340
      %v412 = vunpack.c.l.b16 %v341
      %v413 = vunpack.c.l.b16 %v342
      %v414 = vunpack.c.l.b16 %v343
      %v415 = vunpack.c.l.b16 %v344
      %v416 = vunpack.c.l.b16 %v345
      %v417 = vunpack.c.l.b16 %v346
      %v418 = vunpack.c.l.b16 %v347
      %v419 = vunpack.c.l.b16 %v348
      %v420 = vunpack.c.l.b16 %v349
      %v421 = vunpack.c.l.b16 %v350
      %v422 = vunpack.c.l.b16 %v351
      %v423 = vunpack.c.l.b16 %v352
      %v424 = vunpack.c.l.b16 %v353
      %v425 = vunpack.c.l.b16 %v354
      %v426 = vunpack.c.l.b16 %v355
      %v427 = vunpack.c.l.b16 %v356
      %v428 = vunpack.c.l.b16 %v357
      %v429 = vunpack.c.l.b16 %v358
      %v430 = vunpack.c.l.b16 %v359
      %v431 = vunpack.c.l.b16 %v360
      %v432 = vunpack.c.l.b16 %v361
      %v433 = vunpack.c.l.b16 %v362
      %v434 = vunpack.c.l.b16 %v363
      %v435 = vpack.c.b16 %v404, %v403
      %v436 = vpack.c.b16 %v406, %v405
      %v437 = vpack.c.b16 %v408, %v407
      %v438 = vpack.c.b16 %v410, %v409
      %v439 = vpack.c.b16 %v412, %v411
      %v440 = vpack.c.b16 %v414, %v413
      %v441 = vpack.c.b16 %v416, %v415
      %v442 = vpack.c.b16 %v418, %v417
      %v443 = vpack.c.b16 %v420, %v419
      %v444 = vpack.c.b16 %v422, %v421
      %v445 = vpack.c.b16 %v424, %v423
      %v446 = vpack.c.b16 %v426, %v425
      %v447 = vpack.c.b16 %v428, %v427
      %v448 = vpack.c.b16 %v430, %v429
      %v449 = vpack.c.b16 %v432, %v431
      %v450 = vpack.c.b16 %v434, %v433
      %467 = vmatprep.subr.bf16.mxu0 0
      %468 = vmatpush1.bf16.msra.mxu0 %v442
      %469 = vmatprep.subr.bf16.mxu0 0
      %470 = vmatpush1.bf16.msra.mxu0 %v441
      %471 = vmatprep.subr.bf16.mxu0 0
      %472 = vmatpush1.bf16.msra.mxu0 %v440
      %473 = vmatprep.subr.bf16.mxu0 0
      %474 = vmatpush1.bf16.msra.mxu0 %v439
      %475 = vmatprep.subr.bf16.mxu0 0
      %476 = vmatpush1.bf16.msra.mxu0 %v438
      %477 = vmatprep.subr.bf16.mxu0 0
      %478 = vmatpush1.bf16.msra.mxu0 %v437
      %479 = vmatprep.subr.bf16.mxu0 0
      %480 = vmatpush1.bf16.msra.mxu0 %v436
      %481 = vmatprep.subr.bf16.mxu0 0
      %482 = vmatpush1.bf16.msra.mxu0 %v435
      %483 = vmatprep.subr.bf16.mxu0 0
      %484 = vmatpush2.bf16.msra.mxu0 %v450
      %485 = vmatprep.subr.bf16.mxu0 0
      %486 = vmatpush2.bf16.msra.mxu0 %v449
      %487 = vmatprep.subr.bf16.mxu0 0
      %488 = vmatpush2.bf16.msra.mxu0 %v448
      %489 = vmatprep.subr.bf16.mxu0 0
      %490 = vmatpush2.bf16.msra.mxu0 %v447
      %491 = vmatprep.subr.bf16.mxu0 0
      %492 = vmatpush2.bf16.msra.mxu0 %v446
      %493 = vmatprep.subr.bf16.mxu0 0
      %494 = vmatpush2.bf16.msra.mxu0 %v445
      %495 = vmatprep.subr.bf16.mxu0 0
      %496 = vmatpush2.bf16.msra.mxu0 %v444
      %497 = vmatprep.subr.bf16.mxu0 0
      %498 = vmatpush2.bf16.msra.mxu0 %v443
      %499 = vmatprep.mubr.bf16.mxu0 %v331
      %500 = vmatmul.mubr.bf16.gmra.mxu0 %v330
      %v501 = vpop.f32.mrf.mxu0
      %v502 = vadd.f32 %v369, %v501
      %v503 = vpop.f32.mrf.mxu0
      %v504 = vpop.f32.mrf.mxu0
      %v505 = vpop.f32.mrf.mxu0
      %506 = vdwg.mxu0
      %v507 = vmax.f32 %v502, 0.0
      %v508 = vpack.c.bf16 %v507, %v507
      %v509 = vld [vmem:[%s5] sm:$0xf]
      %v510 = vld [vmem:[%s5 + $0x4] sm:$0xf]
      %v511 = vld [vmem:[%s5 + $0x8] sm:$0xf]
      %v512 = vld [vmem:[%s5 + $0xc] sm:$0xf]
      %v513 = vld [vmem:[%s5 + $0x10] sm:$0xf]
      %v514 = vld [vmem:[%s5 + $0x14] sm:$0xf]
      %v515 = vld [vmem:[%s5 + $0x18] sm:$0xf]
      %v516 = vld [vmem:[%s5 + $0x1c] sm:$0xf]
      %v517 = vld [vmem:[%s5 + $0x20] sm:$0xf]
      %v518 = vld [vmem:[%s5 + $0x24] sm:$0xf]
      %v519 = vld [vmem:[%s5 + $0x28] sm:$0xf]
      %v520 = vld [vmem:[%s5 + $0x2c] sm:$0xf]
      %v521 = vld [vmem:[%s5 + $0x30] sm:$0xf]
      %v522 = vld [vmem:[%s5 + $0x34] sm:$0xf]
      %v523 = vld [vmem:[%s5 + $0x38] sm:$0xf]
      %v524 = vld [vmem:[%s5 + $0x3c] sm:$0xf]
      %v525 = vld [vmem:[%s6] sm:$0x1]
      %v527 = vlaneseq
      %v528 = vshrl.u32 %v527, 7
      %v529 = vsub.s32 0, %v528
      %v530 = vrot.slane %v525, %v529
      %v548 = vunpack.c.l.b16 %v509
      %v549 = vunpack.c.l.b16 %v510
      %v550 = vunpack.c.l.b16 %v511
      %v551 = vunpack.c.l.b16 %v512
      %v552 = vunpack.c.l.b16 %v513
      %v553 = vunpack.c.l.b16 %v514
      %v554 = vunpack.c.l.b16 %v515
      %v555 = vunpack.c.l.b16 %v516
      %v556 = vunpack.c.l.b16 %v517
      %v557 = vunpack.c.l.b16 %v518
      %v558 = vunpack.c.l.b16 %v519
      %v559 = vunpack.c.l.b16 %v520
      %v560 = vunpack.c.l.b16 %v521
      %v561 = vunpack.c.l.b16 %v522
      %v562 = vunpack.c.l.b16 %v523
      %v563 = vunpack.c.l.b16 %v524
      %v564 = vpack.c.b16 %v549, %v548
      %v565 = vpack.c.b16 %v551, %v550
      %v566 = vpack.c.b16 %v553, %v552
      %v567 = vpack.c.b16 %v555, %v554
      %v568 = vpack.c.b16 %v557, %v556
      %v569 = vpack.c.b16 %v559, %v558
      %v570 = vpack.c.b16 %v561, %v560
      %v571 = vpack.c.b16 %v563, %v562
      %580 = vmatprep.subr.bf16.mxu0 0
      %581 = vmatpush1.bf16.msra.mxu0 %v571
      %582 = vmatprep.subr.bf16.mxu0 0
      %583 = vmatpush1.bf16.msra.mxu0 %v570
      %584 = vmatprep.subr.bf16.mxu0 0
      %585 = vmatpush1.bf16.msra.mxu0 %v569
      %586 = vmatprep.subr.bf16.mxu0 0
      %587 = vmatpush1.bf16.msra.mxu0 %v568
      %588 = vmatprep.subr.bf16.mxu0 0
      %589 = vmatpush1.bf16.msra.mxu0 %v567
      %590 = vmatprep.subr.bf16.mxu0 0
      %591 = vmatpush1.bf16.msra.mxu0 %v566
      %592 = vmatprep.subr.bf16.mxu0 0
      %593 = vmatpush1.bf16.msra.mxu0 %v565
      %594 = vmatprep.subr.bf16.mxu0 0
      %595 = vmatpush1.bf16.msra.mxu0 %v564
      %596 = vmatprep.subr.bf16.mxu0 0
      %597 = vmatpush2.bf16.msra.mxu0 0
      %598 = vmatprep.subr.bf16.mxu0 0
      %599 = vmatpush2.bf16.msra.mxu0 0
      %600 = vmatprep.subr.bf16.mxu0 0
      %601 = vmatpush2.bf16.msra.mxu0 0
      %602 = vmatprep.subr.bf16.mxu0 0
      %603 = vmatpush2.bf16.msra.mxu0 0
      %604 = vmatprep.subr.bf16.mxu0 0
      %605 = vmatpush2.bf16.msra.mxu0 0
      %606 = vmatprep.subr.bf16.mxu0 0
      %607 = vmatpush2.bf16.msra.mxu0 0
      %608 = vmatprep.subr.bf16.mxu0 0
      %609 = vmatpush2.bf16.msra.mxu0 0
      %610 = vmatprep.subr.bf16.mxu0 0
      %611 = vmatpush2.bf16.msra.mxu0 0
      %612 = vmatprep.mubr.bf16.mxu0 0
      %613 = vmatmul.mubr.bf16.gmra.mxu0 %v508
      %v614 = vpop.f32.mrf.mxu0
      %v615 = vadd.f32 %v530, %v614
      %v616 = vpop.f32.mrf.mxu0
      %v617 = vpop.f32.mrf.mxu0
      %v618 = vpop.f32.mrf.mxu0
      %619 = vdwg.mxu0
      %vm620 = vcmask 80896
      %621 = vst.msk [vmem:[#allocation8] sm:$0xff] %vm620, %v615
    $region49: #{tpu_custom_call.1} parent=1 // pred_fallthru
      _
    // Predicated region
    $region50: #{tpu_custom_call.1} parent=1 // pred_check
      _
    $region51: #{tpu_custom_call.1} parent=1 // pred_check_branch
      %623 = sbr.rel (0) target = $region53
    $region52: #{tpu_custom_call.1} parent=1 // pred_region
      %s625 = ssub.s32 128, 128
      %626 = vsyncadd [#allocation5], %s625
      %s628 = sshll.u32 [#allocation8], 4
      %s629 = int_to_ptr.vmem [resolvable:$true] %s628
      %631 = dma.vmem_to_hbm [thread:$0]  %s629, 128, %s7, [#allocation5]
    $region53: #{tpu_custom_call.1} parent=1 // pred_fallthru
      _
    // Predicated region
    $region54: #{tpu_custom_call.1} parent=1 // pred_check
      _
    $region55: #{tpu_custom_call.1} parent=1 // pred_check_branch
      %633 = sbr.rel (0) target = $region57
    $region56: #{tpu_custom_call.1} parent=1 // pred_region
      %634 = dma.done [#allocation5], 128
    $region57: #{tpu_custom_call.1} parent=1 // pred_fallthru
      _
    %635 = vsyncpa [#allocation4], 1
    %636 = vsyncpa [#allocation7], 1
    %637 = vsyncpa [#allocation5], 1

</llo_original>
